<compile_context>
chip_gen: v7x
topology: tpu7x:2x2x1
jax: 0.10.0
libtpu: 0.0.40
codegen_flags: <defaults>
</compile_context>

<pallas_src>
import functools

import jax
import jax.numpy as jnp
from jax.experimental import pallas as pl
from jax.experimental.pallas import tpu as pltpu

LANE = 128


def _dice_partials_kernel(logits_ref, targets_ref, inter_ref, union_ref, *,
                          softmax: bool, hw: int, s_tile: int,
                          need_mask: bool):
    """Grid = (spatial shard, batch n, spatial tile s).

    Input blocks are (1, C, s_tile, 128); output blocks (1, C, 128) stay
    resident across the sequential s axis and accumulate lane-shaped partial
    intersection / union sums per (shard, n, c).
    """
    sh = pl.program_id(0)
    s = pl.program_id(2)
    ns = pl.num_programs(2)

    @pl.when(s == 0)
    def _():
        inter_ref[...] = jnp.zeros_like(inter_ref)
        union_ref[...] = jnp.zeros_like(union_ref)

    # The only f32 cast: inputs may arrive as bf16/f16/f32.
    x = logits_ref[...].astype(jnp.float32)    # (1, C, s_tile, LANE)
    t = targets_ref[...].astype(jnp.float32)   # (1, C, s_tile, LANE)

    if softmax:
        # C is a leading axis -> elementwise VPU max/add across C slabs.
        m = jnp.max(x, axis=1, keepdims=True)
        e = jnp.exp(x - m)
        d = jnp.sum(e, axis=1, keepdims=True)          # (1, 1, s_tile, LANE)
        # EUP seed + two Newton refinements: f32-accurate, spares VALU slots.
        r = pl.reciprocal(d, approx=True)
        r = r * (2.0 - d * r)
        r = r * (2.0 - d * r)
        probs = e * r
    else:
        probs = x

    # Targets are zero in the padded region: the intersection and sum(t) need
    # no mask; only sum(probs) does (softmax of zero-padded logits is 1/C).
    inter_ref[...] += jnp.sum(probs * t, axis=2)       # (1, C, LANE)
    t_sum = jnp.sum(t, axis=2)                         # (1, C, LANE)

    if need_mask:
        tile_pix = s_tile * LANE
        tile_start = (sh * ns + s) * tile_pix          # global pixel offset
        contains_pad = tile_start + tile_pix > hw

        @pl.when(jnp.logical_not(contains_pad))
        def _():
            union_ref[...] += jnp.sum(probs, axis=2) + t_sum

        @pl.when(contains_pad)
        def _():
            row = jax.lax.broadcasted_iota(jnp.int32, (1, 1, s_tile, LANE), 2)
            col = jax.lax.broadcasted_iota(jnp.int32, (1, 1, s_tile, LANE), 3)
            pix = tile_start + row * LANE + col
            probs_m = jnp.where(pix < hw, probs, 0.0)
            union_ref[...] += jnp.sum(probs_m, axis=2) + t_sum
    else:
        union_ref[...] += jnp.sum(probs, axis=2) + t_sum


def _vmem_capacity_bytes() -> int:
    try:
        return int(pltpu.get_tpu_info().vmem_capacity_bytes)
    except Exception:
        return 64 << 20          # conservative (v7x-sized) fallback


def dice_loss(logits, targets, eps: float = 1e-6, softmax: bool = True,
              num_spatial_shards=None):
    """Pallas equivalent of DICELoss.forward; returns a scalar f32.

    Feed logits/targets in their native dtype (bf16 upstream halves HBM
    traffic on mem-bound v5e/v6e); the only f32 cast lives inside the kernel.
    """
    N, C, H, W = logits.shape
    assert targets.shape == (N, C, H, W)
    HW = H * W
    S = -(-HW // LANE)                       # spatial rows of 128 lanes

    # Generation-aware VMEM budget: 128 MiB on v5e/v6e, 64 MiB on v7x.
    vmem_cap = _vmem_capacity_bytes()
    vmem_limit = (64 << 20) if vmem_cap >= (100 << 20) else (32 << 20)

    # Spatial-shard parallel axis: keeps a v7x chip's second TensorCore busy
    # when the batch axis alone cannot (N == 1).  Harmless elsewhere.
    if num_spatial_shards is None:
        num_shards = 2 if (N == 1 and S >= 16) else 1
    else:
        num_shards = max(1, int(num_spatial_shards))

    # Dtype-aware tile sizing.  Per spatial row (128 lanes x C channels) the
    # steady state holds 2 pipeline buffers per input in its native dtype plus
    # ~6 f32 temporaries (x, t, e, probs, product, masked copy); keep all of
    # that within roughly half the scoped VMEM limit.
    l_item = jnp.dtype(logits.dtype).itemsize
    t_item = jnp.dtype(targets.dtype).itemsize
    bytes_per_row = C * LANE * (2 * (l_item + t_item) + 6 * 4)
    max_rows = max(8, int((vmem_limit // 2) // bytes_per_row) // 8 * 8)

    if num_shards == 1:
        if S <= max_rows:
            s_tile = S                        # single full-extent tile
            ns_per_shard = 1
        else:
            s_tile = max_rows                 # multiple of 8
            ns_per_shard = -(-S // s_tile)
    else:
        rows_per_shard = -(-S // num_shards)
        rows_per_shard = -(-rows_per_shard // 8) * 8      # round up to 8
        s_tile = max(8, min(max_rows, rows_per_shard))    # multiple of 8
        ns_per_shard = -(-rows_per_shard // s_tile)

    S_pad = num_shards * ns_per_shard * s_tile
    HW_pad = S_pad * LANE
    # Zero-padded logits contribute nothing when softmax is off, so the mask
    # is only needed for the softmax path.
    need_mask = (HW_pad != HW) and softmax

    # No dtype cast here: feed native (possibly narrow) dtypes straight in.
    l3 = logits.reshape(N, C, HW)
    t3 = targets.reshape(N, C, HW)
    if HW_pad != HW:
        pad = HW_pad - HW
        l3 = jnp.pad(l3, ((0, 0), (0, 0), (0, pad)))
        t3 = jnp.pad(t3, ((0, 0), (0, 0), (0, pad)))
    l4 = l3.reshape(N, C, S_pad, LANE)
    t4 = t3.reshape(N, C, S_pad, LANE)

    kernel = functools.partial(
        _dice_partials_kernel, softmax=softmax, hw=HW, s_tile=s_tile,
        need_mask=need_mask)

    in_map = lambda sh, n, s, _ns=ns_per_shard: (n, 0, sh * _ns + s, 0)
    out_map = lambda sh, n, s, _N=N: (sh * _N + n, 0, 0)

    inter_p, union_p = pl.pallas_call(
        kernel,
        out_shape=(
            jax.ShapeDtypeStruct((num_shards * N, C, LANE), jnp.float32),
            jax.ShapeDtypeStruct((num_shards * N, C, LANE), jnp.float32),
        ),
        grid_spec=pltpu.PrefetchScalarGridSpec(
            num_scalar_prefetch=0,
            grid=(num_shards, N, ns_per_shard),
            in_specs=[
                pl.BlockSpec((1, C, s_tile, LANE), in_map),
                pl.BlockSpec((1, C, s_tile, LANE), in_map),
            ],
            out_specs=(
                pl.BlockSpec((1, C, LANE), out_map),
                pl.BlockSpec((1, C, LANE), out_map),
            ),
        ),
        compiler_params=pltpu.CompilerParams(
            dimension_semantics=("parallel", "parallel", "arbitrary"),
            vmem_limit_bytes=vmem_limit),
    )(l4, t4)

    # Tiny epilogue in JAX: combine shards, reduce lanes, dice ratio, mean.
    inter = jnp.sum(inter_p.reshape(num_shards, N, C, LANE), axis=(0, 3))
    union = jnp.sum(union_p.reshape(num_shards, N, C, LANE), axis=(0, 3))
    dice = (2.0 * inter + eps) / (union + eps)
    return jnp.mean(1.0 - dice)


def _dice_loss_ref(logits, targets, eps=1e-6, softmax=True):
    x = logits.astype(jnp.float32)
    probs = jax.nn.softmax(x, axis=1) if softmax else x
    t = targets.astype(jnp.float32)
    intersection = jnp.sum(probs * t, axis=(2, 3))
    union = jnp.sum(probs + t, axis=(2, 3))
    dice_score = (2.0 * intersection + eps) / (union + eps)
    return jnp.mean(1.0 - dice_score)


def _check(name, got, want):
    if not jnp.allclose(got, want, atol=1e-5, rtol=1e-5):
        raise AssertionError(f"mismatch ({name}): pallas={got} ref={want}")


if __name__ == "__main__":
    key = jax.random.PRNGKey(0)
    k1, k2, k3, k4, k5, k6 = jax.random.split(key, 6)

    # Case 1: aligned spatial extent; targets fed as narrow (bf16) one-hot.
    N, C, H, W = 2, 4, 16, 16
    logits = jax.random.normal(k1, (N, C, H, W), dtype=jnp.float32)
    labels = jax.random.randint(k2, (N, H, W), 0, C)
    targets = jnp.transpose(jax.nn.one_hot(labels, C, dtype=jnp.bfloat16),
                            (0, 3, 1, 2))                      # NCHW, bf16
    loss = jax.block_until_ready(dice_loss(logits, targets))
    _check("aligned", loss, _dice_loss_ref(logits, targets))

    # Case 2: H*W not a multiple of 128 -> padded tile takes the masked path.
    N2, C2, H2, W2 = 2, 3, 20, 20
    logits2 = jax.random.normal(k3, (N2, C2, H2, W2), dtype=jnp.float32)
    labels2 = jax.random.randint(k4, (N2, H2, W2), 0, C2)
    targets2 = jnp.transpose(jax.nn.one_hot(labels2, C2, dtype=jnp.float32),
                             (0, 3, 1, 2))                     # NCHW, f32
    loss2 = jax.block_until_ready(dice_loss(logits2, targets2))
    _check("masked", loss2, _dice_loss_ref(logits2, targets2))

    # Case 3: N == 1 -> auto spatial-shard parallel axis (2 shards); exercises
    # both the unmasked interior-tile path and the masked last-tile path.
    N3, C3, H3, W3 = 1, 3, 48, 48
    logits3 = jax.random.normal(k5, (N3, C3, H3, W3), dtype=jnp.float32)
    labels3 = jax.random.randint(k6, (N3, H3, W3), 0, C3)
    targets3 = jnp.transpose(jax.nn.one_hot(labels3, C3, dtype=jnp.bfloat16),
                             (0, 3, 1, 2))                     # NCHW, bf16
    loss3 = jax.block_until_ready(dice_loss(logits3, targets3))
    _check("sharded", loss3, _dice_loss_ref(logits3, targets3))

    # Case 4: softmax=False with padding -> no mask needed (zero pads).
    probs4 = jax.nn.softmax(logits2, axis=1)
    loss4 = jax.block_until_ready(dice_loss(probs4, targets2, softmax=False))
    _check("no-softmax", loss4, _dice_loss_ref(probs4, targets2, softmax=False))

    print("KERNEL_OK")
</pallas_src>

<mosaic_0001>
module attributes {stable_mosaic.version = 11 : i64} {
  func.func @_dice_partials_kernel(%arg0: i32, %arg1: i32, %arg2: i32, %arg3: memref<1x4x2x128xf32, #tpu.memory_space<vmem>>, %arg4: memref<1x4x2x128xbf16, #tpu.memory_space<vmem>>, %arg5: memref<1x4x128xf32, #tpu.memory_space<vmem>>, %arg6: memref<1x4x128xf32, #tpu.memory_space<vmem>>) attributes {dimension_semantics = [#tpu.dimension_semantics<parallel>, #tpu.dimension_semantics<parallel>, #tpu.dimension_semantics<arbitrary>], iteration_bounds = array<i64: 1, 2, 1>, scalar_prefetch = 0 : i64, scratch_operands = 0 : i64, tpu.core_type = #tpu.core_type<tc>, window_params = [{transform_indices = @transform_0, window_bounds = array<i64: 1, 4, 2, 128>}, {transform_indices = @transform_1, window_bounds = array<i64: 1, 4, 2, 128>}, {transform_indices = @transform_2, window_bounds = array<i64: 1, 4, 128>}, {transform_indices = @transform_3, window_bounds = array<i64: 1, 4, 128>}]} {
    %c0_i32 = arith.constant 0 : i32
    %0 = arith.cmpi eq, %arg2, %c0_i32 : i32
    %1 = arith.extui %0 : i1 to i32
    %c0_i32_0 = arith.constant 0 : i32
    %2 = arith.cmpi ne, %1, %c0_i32_0 : i32
    scf.if %2 {
      %cst_26 = arith.constant 0.000000e+00 : f32
      %35 = vector.broadcast %cst_26 : f32 to vector<1x4x128xf32>
      %c0_27 = arith.constant 0 : index
      %c0_28 = arith.constant 0 : index
      %c0_29 = arith.constant 0 : index
      %36 = vector.load %arg5[%c0_27, %c0_28, %c0_29] : memref<1x4x128xf32, #tpu.memory_space<vmem>>, vector<1x4x128xf32>
      tpu.vector_store %arg5[%c0_27, %c0_28, %c0_29], %35 {strides = array<i32>} : memref<1x4x128xf32, #tpu.memory_space<vmem>>, vector<1x4x128xf32>,
      %cst_30 = arith.constant 0.000000e+00 : f32
      %37 = vector.broadcast %cst_30 : f32 to vector<1x4x128xf32>
      %c0_31 = arith.constant 0 : index
      %c0_32 = arith.constant 0 : index
      %c0_33 = arith.constant 0 : index
      %38 = vector.load %arg6[%c0_31, %c0_32, %c0_33] : memref<1x4x128xf32, #tpu.memory_space<vmem>>, vector<1x4x128xf32>
      tpu.vector_store %arg6[%c0_31, %c0_32, %c0_33], %37 {strides = array<i32>} : memref<1x4x128xf32, #tpu.memory_space<vmem>>, vector<1x4x128xf32>,
    } else {
    }
    %c0 = arith.constant 0 : index
    %c0_1 = arith.constant 0 : index
    %c0_2 = arith.constant 0 : index
    %c0_3 = arith.constant 0 : index
    %3 = vector.load %arg3[%c0, %c0_1, %c0_2, %c0_3] : memref<1x4x2x128xf32, #tpu.memory_space<vmem>>, vector<1x4x2x128xf32>
    %c0_4 = arith.constant 0 : index
    %c0_5 = arith.constant 0 : index
    %c0_6 = arith.constant 0 : index
    %c0_7 = arith.constant 0 : index
    %4 = vector.load %arg4[%c0_4, %c0_5, %c0_6, %c0_7] : memref<1x4x2x128xbf16, #tpu.memory_space<vmem>>, vector<1x4x2x128xbf16>
    %5 = arith.extf %4 : vector<1x4x2x128xbf16> to vector<1x4x2x128xf32>
    %cst = arith.constant dense<0xFF800000> : vector<1x2x128xf32>
    %6 = vector.multi_reduction <maximumf>, %3, %cst [1] : vector<1x4x2x128xf32> to vector<1x2x128xf32>
    %7 = vector.shape_cast %6 : vector<1x2x128xf32> to vector<1x1x2x128xf32>
    %8 = vector.broadcast %7 : vector<1x1x2x128xf32> to vector<1x4x2x128xf32>
    %9 = arith.subf %3, %8 : vector<1x4x2x128xf32>
    %10 = math.exp %9 : vector<1x4x2x128xf32>
    %cst_8 = arith.constant dense<0.000000e+00> : vector<1x2x128xf32>
    %11 = vector.multi_reduction <add>, %10, %cst_8 [1] : vector<1x4x2x128xf32> to vector<1x2x128xf32>
    %12 = vector.shape_cast %11 : vector<1x2x128xf32> to vector<1x1x2x128xf32>
    %13 = tpu.reciprocal %12 {approx = true} : vector<1x1x2x128xf32> -> vector<1x1x2x128xf32>
    %14 = arith.mulf %12, %13 : vector<1x1x2x128xf32>
    %cst_9 = arith.constant 2.000000e+00 : f32
    %15 = vector.broadcast %cst_9 : f32 to vector<1x1x2x128xf32>
    %16 = arith.subf %15, %14 : vector<1x1x2x128xf32>
    %17 = arith.mulf %13, %16 : vector<1x1x2x128xf32>
    %18 = arith.mulf %12, %17 : vector<1x1x2x128xf32>
    %cst_10 = arith.constant 2.000000e+00 : f32
    %19 = vector.broadcast %cst_10 : f32 to vector<1x1x2x128xf32>
    %20 = arith.subf %19, %18 : vector<1x1x2x128xf32>
    %21 = arith.mulf %17, %20 : vector<1x1x2x128xf32>
    %22 = vector.broadcast %21 : vector<1x1x2x128xf32> to vector<1x4x2x128xf32>
    %23 = arith.mulf %10, %22 : vector<1x4x2x128xf32>
    %c0_11 = arith.constant 0 : index
    %c0_12 = arith.constant 0 : index
    %c0_13 = arith.constant 0 : index
    %24 = vector.load %arg5[%c0_11, %c0_12, %c0_13] : memref<1x4x128xf32, #tpu.memory_space<vmem>>, vector<1x4x128xf32>
    %25 = arith.mulf %23, %5 : vector<1x4x2x128xf32>
    %cst_14 = arith.constant dense<0.000000e+00> : vector<1x4x128xf32>
    %26 = vector.multi_reduction <add>, %25, %cst_14 [2] : vector<1x4x2x128xf32> to vector<1x4x128xf32>
    %27 = arith.addf %24, %26 : vector<1x4x128xf32>
    %c0_15 = arith.constant 0 : index
    %c0_16 = arith.constant 0 : index
    %c0_17 = arith.constant 0 : index
    %28 = vector.load %arg5[%c0_15, %c0_16, %c0_17] : memref<1x4x128xf32, #tpu.memory_space<vmem>>, vector<1x4x128xf32>
    tpu.vector_store %arg5[%c0_15, %c0_16, %c0_17], %27 {strides = array<i32>} : memref<1x4x128xf32, #tpu.memory_space<vmem>>, vector<1x4x128xf32>,
    %cst_18 = arith.constant dense<0.000000e+00> : vector<1x4x128xf32>
    %29 = vector.multi_reduction <add>, %5, %cst_18 [2] : vector<1x4x2x128xf32> to vector<1x4x128xf32>
    %c0_19 = arith.constant 0 : index
    %c0_20 = arith.constant 0 : index
    %c0_21 = arith.constant 0 : index
    %30 = vector.load %arg6[%c0_19, %c0_20, %c0_21] : memref<1x4x128xf32, #tpu.memory_space<vmem>>, vector<1x4x128xf32>
    %cst_22 = arith.constant dense<0.000000e+00> : vector<1x4x128xf32>
    %31 = vector.multi_reduction <add>, %23, %cst_22 [2] : vector<1x4x2x128xf32> to vector<1x4x128xf32>
    %32 = arith.addf %31, %29 : vector<1x4x128xf32>
    %33 = arith.addf %30, %32 : vector<1x4x128xf32>
    %c0_23 = arith.constant 0 : index
    %c0_24 = arith.constant 0 : index
    %c0_25 = arith.constant 0 : index
    %34 = vector.load %arg6[%c0_23, %c0_24, %c0_25] : memref<1x4x128xf32, #tpu.memory_space<vmem>>, vector<1x4x128xf32>
    tpu.vector_store %arg6[%c0_23, %c0_24, %c0_25], %33 {strides = array<i32>} : memref<1x4x128xf32, #tpu.memory_space<vmem>>, vector<1x4x128xf32>,
    return
  }
  func.func @transform_0(%arg0: i32, %arg1: i32, %arg2: i32) -> (i32, i32, i32, i32) {
    %c1_i32 = arith.constant 1 : i32
    %0 = arith.muli %arg0, %c1_i32 : i32
    %1 = arith.addi %0, %arg2 : i32
    %c0_i32 = arith.constant 0 : i32
    %c0_i32_0 = arith.constant 0 : i32
    %c0_i32_1 = arith.constant 0 : i32
    return %arg1, %c0_i32, %1, %c0_i32_0 : i32, i32, i32, i32
  }
  func.func @transform_1(%arg0: i32, %arg1: i32, %arg2: i32) -> (i32, i32, i32, i32) {
    %c1_i32 = arith.constant 1 : i32
    %0 = arith.muli %arg0, %c1_i32 : i32
    %1 = arith.addi %0, %arg2 : i32
    %c0_i32 = arith.constant 0 : i32
    %c0_i32_0 = arith.constant 0 : i32
    %c0_i32_1 = arith.constant 0 : i32
    return %arg1, %c0_i32, %1, %c0_i32_0 : i32, i32, i32, i32
  }
  func.func @transform_2(%arg0: i32, %arg1: i32, %arg2: i32) -> (i32, i32, i32) {
    %c2_i32 = arith.constant 2 : i32
    %0 = arith.muli %arg0, %c2_i32 : i32
    %1 = arith.addi %0, %arg1 : i32
    %c0_i32 = arith.constant 0 : i32
    %c0_i32_0 = arith.constant 0 : i32
    %c0_i32_1 = arith.constant 0 : i32
    return %1, %c0_i32, %c0_i32_0 : i32, i32, i32
  }
  func.func @transform_3(%arg0: i32, %arg1: i32, %arg2: i32) -> (i32, i32, i32) {
    %c2_i32 = arith.constant 2 : i32
    %0 = arith.muli %arg0, %c2_i32 : i32
    %1 = arith.addi %0, %arg1 : i32
    %c0_i32 = arith.constant 0 : i32
    %c0_i32_0 = arith.constant 0 : i32
    %c0_i32_1 = arith.constant 0 : i32
    return %1, %c0_i32, %c0_i32_0 : i32, i32, i32
  }
}

</mosaic_0001>

<llo_original>
// kernel: tpu_custom_call.1
$region0: #{tpu_custom_call.1}
  #allocation0 [shape = 'u32[]', space=smem, size = 0x4, offset = 0x4, fixed_abs, tag = 'smem constant byte address 0x4 - core index']
  #allocation1 [shape = 'u32[144,128]{1,0:T(1,128)}', space=vmem, size = 0x12000, scoped, tag = 'internal scratch']
  %s0 = inlined_call_operand.hbm [shape: f32[2,4,2,128], index: 0, kind: input, shape index: {}]
  %s1 = inlined_call_operand.hbm [shape: bf16[2,4,2,128], index: 1, kind: input, shape index: {}]
  %s2 = inlined_call_operand.hbm [shape: f32[2,4,128], index: 2, kind: output, shape index: {0}]
  %s3 = inlined_call_operand.hbm [shape: f32[2,4,128], index: 3, kind: output, shape index: {1}]
  %4 = xla_tuple %s2, %s3
  %s5 = sld [smem:[#allocation0]]
  $region61: #{tpu_custom_call.1} parent=0
    _
  %s7 = ssub.s32 1, %s5
  %s8 = scalar_select 0, %s7, %s5
  $region1: #{tpu_custom_call.1} parent=0
    #allocation2 [shape = 'u8[8192]{0}', space=vmem, size = 0x2000, scoped, tag = 'input window, operand 0']
    #allocation3 [shape = 's32[2]{0}', space=sflag, size = 0x8, scoped, tag = 'scoped memory for tpu_custom_call.1']
    #allocation4 [shape = 's32[2]{0}', space=sflag, size = 0x8, scoped, tag = 'scoped memory for tpu_custom_call.1']
    #allocation5 [shape = 'u8[4096]{0}', space=vmem, size = 0x1000, scoped, tag = 'input window, operand 1']
    #allocation6 [shape = 's32[2]{0}', space=sflag, size = 0x8, scoped, tag = 'scoped memory for tpu_custom_call.1']
    #allocation7 [shape = 'u8[4096]{0}', space=vmem, size = 0x1000, scoped, tag = 'output window, operand 0']
    #allocation8 [shape = 'u8[4096]{0}', space=vmem, size = 0x1000, scoped, tag = 'output window, operand 1']
    #allocation9 [shape = 's32[2]{0}', space=sflag, size = 0x8, scoped, tag = 'scoped memory for tpu_custom_call.1']
    %9 = vsyncpa [#allocation3], 0
    %s10 = scalar_lea.sflag [#allocation3], 1
    %11 = vsyncpa %s10, 0
    %12 = vsyncpa [#allocation6], 0
    %s13 = scalar_lea.sflag [#allocation6], 1
    %14 = vsyncpa %s13, 0
    %15 = vsyncpa [#allocation4], 0
    %s16 = scalar_lea.sflag [#allocation4], 1
    %17 = vsyncpa %s16, 0
    %18 = vsyncpa [#allocation9], 0
    %s19 = scalar_lea.sflag [#allocation9], 1
    %20 = vsyncpa %s19, 0
    loop: start=0, step=1, limit=4
    $region2: #{tpu_custom_call.1} parent=1 // loop_pre_header
      _
    $region3: #{tpu_custom_call.1} parent=1 // loop_header
      %s22 = sphi 0, %s26
      %p23 = scmp.ge.s32.totalorder %s22, 4
      %s29 = sphi 0, %s48
      %s30 = sphi 0, %s44
      %s31 = sphi 0, %s40
      %s32 = sphi 0, %s29
      %s33 = sphi 0, %s30
      %s34 = sphi 0, %s31
      %s35 = sphi 0, %s32
      %s36 = sphi 0, %s33
      %s37 = sphi 0, %s34
      %s55 = sphi 0, %s57
      %s58 = sphi 0, %s55
      %s59 = sphi 0, %s58
      %s75 = sphi 0, %s59
      %s85 = sphi 0, %s87
      %s88 = sphi 0, %s85
      %s89 = sphi 0, %s88
      %s105 = sphi 0, %s89
      %s115 = sphi 0, %s117
      %s118 = sphi 0, %s115
      %s119 = sphi 0, %s118
      %s135 = sphi 0, %s119
      %s145 = sphi 0, %s147
      %s148 = sphi 0, %s145
      %s149 = sphi 0, %s148
      %s165 = sphi 0, %s149
    $region4: #{tpu_custom_call.1} parent=1 // loop_header_branch
      %25 = sbr.rel (%p23) target = $region8
    $region5: #{tpu_custom_call.1} parent=1 // loop_body
      %s27 = ssub.s32 %s22, 1
      %s28 = ssub.s32 %s22, 2
      %s38 = sadd.s32 1, %s31
      %p39 = scmp.ge.s32.totalorder %s38, 1
      %s40 = scalar_select %p39, 0, %s38
      %s41 = sadd.s32 1, %s30
      %s42 = scalar_select %p39, %s41, %s30
      %p43 = scmp.ge.s32.totalorder %s42, 2
      %s44 = scalar_select %p43, 0, %s42
      %s45 = sadd.s32 1, %s29
      %s46 = scalar_select %p43, %s45, %s29
      %p47 = scmp.ge.s32.totalorder %s46, 1
      %s48 = scalar_select %p47, 0, %s46
      %s49 = sadd.s32 %s29, %s31
      %s50 = sadd.s32 %s48, %s40
      %s51 = ssub.s32 %s30, %s44
      %s52 = ssub.s32 %s49, %s50
      %s53 = sor.u32 %s51, %s52
      %p54 = scmp.eq.s32.totalorder %s53, 0
      %s56 = sadd.s32 %s55, 1
      %s57 = scalar_select %p54, %s55, %s56
      %p60 = pneg %p54
      %p61 = scmp.eq.s32.totalorder %s22, 1
      %p62 = por %p60, %p61
      %p63 = scmp.ne.s32.totalorder %s55, %s58
      %p64 = scmp.eq.s32.totalorder %s22, 0
      %p65 = por %p63, %p64
      %p66 = scmp.ne.s32.totalorder %s55, %s58
      %p67 = scmp.eq.s32.totalorder %s27, 1
      %p68 = por %p66, %p67
      %p69 = scmp.ne.s32.totalorder %s58, %s59
      %p70 = scmp.eq.s32.totalorder %s27, 0
      %p71 = por %p69, %p70
      %p72 = scmp.ne.s32.totalorder %s58, %s59
      %p73 = scmp.eq.s32.totalorder %s28, 1
      %p74 = por %p72, %p73
      %p76 = scmp.ne.s32.totalorder %s59, %s75
      %p77 = scmp.eq.s32.totalorder %s28, 0
      %p78 = por %p76, %p77
      %s79 = sadd.s32 %s29, %s31
      %s80 = sadd.s32 %s48, %s40
      %s81 = ssub.s32 %s30, %s44
      %s82 = ssub.s32 %s79, %s80
      %s83 = sor.u32 %s81, %s82
      %p84 = scmp.eq.s32.totalorder %s83, 0
      %s86 = sadd.s32 %s85, 1
      %s87 = scalar_select %p84, %s85, %s86
      %p90 = pneg %p84
      %p91 = scmp.eq.s32.totalorder %s22, 1
      %p92 = por %p90, %p91
      %p93 = scmp.ne.s32.totalorder %s85, %s88
      %p94 = scmp.eq.s32.totalorder %s22, 0
      %p95 = por %p93, %p94
      %p96 = scmp.ne.s32.totalorder %s85, %s88
      %p97 = scmp.eq.s32.totalorder %s27, 1
      %p98 = por %p96, %p97
      %p99 = scmp.ne.s32.totalorder %s88, %s89
      %p100 = scmp.eq.s32.totalorder %s27, 0
      %p101 = por %p99, %p100
      %p102 = scmp.ne.s32.totalorder %s88, %s89
      %p103 = scmp.eq.s32.totalorder %s28, 1
      %p104 = por %p102, %p103
      %p106 = scmp.ne.s32.totalorder %s89, %s105
      %p107 = scmp.eq.s32.totalorder %s28, 0
      %p108 = por %p106, %p107
      %s109 = smul.u32 %s29, 2
      %s110 = sadd.s32 %s109, %s30
      %s111 = smul.u32 %s48, 2
      %s112 = sadd.s32 %s111, %s44
      %s113 = ssub.s32 %s110, %s112
      %p114 = scmp.eq.s32.totalorder %s113, 0
      %s116 = sadd.s32 %s115, 1
      %s117 = scalar_select %p114, %s115, %s116
      %p120 = pneg %p114
      %p121 = scmp.eq.s32.totalorder %s22, 1
      %p122 = por %p120, %p121
      %p123 = scmp.ne.s32.totalorder %s115, %s118
      %p124 = scmp.eq.s32.totalorder %s22, 0
      %p125 = por %p123, %p124
      %p126 = scmp.ne.s32.totalorder %s115, %s118
      %p127 = scmp.eq.s32.totalorder %s27, 1
      %p128 = por %p126, %p127
      %p129 = scmp.ne.s32.totalorder %s118, %s119
      %p130 = scmp.eq.s32.totalorder %s27, 0
      %p131 = por %p129, %p130
      %p132 = scmp.ne.s32.totalorder %s118, %s119
      %p133 = scmp.eq.s32.totalorder %s28, 1
      %p134 = por %p132, %p133
      %p136 = scmp.ne.s32.totalorder %s119, %s135
      %p137 = scmp.eq.s32.totalorder %s28, 0
      %p138 = por %p136, %p137
      %s139 = smul.u32 %s29, 2
      %s140 = sadd.s32 %s139, %s30
      %s141 = smul.u32 %s48, 2
      %s142 = sadd.s32 %s141, %s44
      %s143 = ssub.s32 %s140, %s142
      %p144 = scmp.eq.s32.totalorder %s143, 0
      %s146 = sadd.s32 %s145, 1
      %s147 = scalar_select %p144, %s145, %s146
      %p150 = pneg %p144
      %p151 = scmp.eq.s32.totalorder %s22, 1
      %p152 = por %p150, %p151
      %p153 = scmp.ne.s32.totalorder %s145, %s148
      %p154 = scmp.eq.s32.totalorder %s22, 0
      %p155 = por %p153, %p154
      %p156 = scmp.ne.s32.totalorder %s145, %s148
      %p157 = scmp.eq.s32.totalorder %s27, 1
      %p158 = por %p156, %p157
      %p159 = scmp.ne.s32.totalorder %s148, %s149
      %p160 = scmp.eq.s32.totalorder %s27, 0
      %p161 = por %p159, %p160
      %p162 = scmp.ne.s32.totalorder %s148, %s149
      %p163 = scmp.eq.s32.totalorder %s28, 1
      %p164 = por %p162, %p163
      %p166 = scmp.ne.s32.totalorder %s149, %s165
      %p167 = scmp.eq.s32.totalorder %s28, 0
      %p168 = por %p166, %p167
      %p169 = scmp.le.s32.totalorder 1, %s22
      %p170 = scmp.lt.s32.totalorder %s22, 3
      %p171 = pnand %p169, %p170
      %p172 = pneg %p171
      // Predicated region
      $region9: #{tpu_custom_call.1} parent=5 // pred_check
        _
      $region10: #{tpu_custom_call.1} parent=5 // pred_check_branch
        %174 = sbr.rel (%p171) target = $region12
      $region11: #{tpu_custom_call.1} parent=5 // pred_region
        %s175 = ssub.s32 %s22, 1
      $region12: #{tpu_custom_call.1} parent=5 // pred_fallthru
        _
      %p176 = scmp.lt.s32.totalorder %s22, 2
      // Predicated region
      $region13: #{tpu_custom_call.1} parent=5 // pred_check
        %p177 = pneg %p176
      $region14: #{tpu_custom_call.1} parent=5 // pred_check_branch
        %179 = sbr.rel (%p177) target = $region16
      $region15: #{tpu_custom_call.1} parent=5 // pred_region
        // Predicated region
        $region17: #{tpu_custom_call.1} parent=15 // pred_check
          %p180 = pneg %p65
        $region18: #{tpu_custom_call.1} parent=15 // pred_check_branch
          %182 = sbr.rel (%p180) target = $region20
        $region19: #{tpu_custom_call.1} parent=15 // pred_region
          %s183 = sand.u32 %s55, 1
          %s184 = scalar_lea.sflag [#allocation3], %s183
          %s185 = sand.u32 %s55, 1
          %s186 = smul.addr %s185, 8
          %s187 = scalar_lea.vmem [#allocation2], %s186
          %s188 = sadd.s32 %s29, %s31
          %s190 = ssub.s32 128, 128
          %191 = vsyncadd %s184, %s190
          %s192 = smul.addr %s30, 4
          %s193 = sadd.s32 %s188, %s192
          %s194 = smul.addr %s193, 32
          %s195 = scalar_lea.hbm %s0, %s194
          %s196 = sshll.u32 %s187, 4
          %s197 = int_to_ptr.vmem [resolvable:$true] %s196
          %202 = dma.hbm_to_vmem [thread:$0]  %s195, 128, %s197, %s184, 32, 32, 2
        $region20: #{tpu_custom_call.1} parent=15 // pred_fallthru
          _
        // Predicated region
        $region21: #{tpu_custom_call.1} parent=15 // pred_check
          %p203 = pneg %p95
        $region22: #{tpu_custom_call.1} parent=15 // pred_check_branch
          %205 = sbr.rel (%p203) target = $region24
        $region23: #{tpu_custom_call.1} parent=15 // pred_region
          %s206 = sand.u32 %s85, 1
          %s207 = scalar_lea.sflag [#allocation6], %s206
          %s208 = sand.u32 %s85, 1
          %s209 = smul.addr %s208, 4
          %s210 = scalar_lea.vmem [#allocation5], %s209
          %s211 = sadd.s32 %s29, %s31
          %s213 = ssub.s32 64, 64
          %214 = vsyncadd %s207, %s213
          %s215 = smul.addr %s30, 4
          %s216 = sadd.s32 %s211, %s215
          %s217 = smul.addr %s216, 16
          %s218 = scalar_lea.hbm %s1, %s217
          %s219 = sshll.u32 %s210, 4
          %s220 = int_to_ptr.vmem [resolvable:$true] %s219
          %225 = dma.hbm_to_vmem [thread:$0]  %s218, 64, %s220, %s207, 16, 16, 1
        $region24: #{tpu_custom_call.1} parent=15 // pred_fallthru
          _
      $region16: #{tpu_custom_call.1} parent=5 // pred_fallthru
        _
      %p226 = scmp.le.s32.totalorder 1, %s22
      %p227 = scmp.lt.s32.totalorder %s22, 3
      %p228 = pnand %p226, %p227
      %p229 = pneg %p228
      // Predicated region
      $region25: #{tpu_custom_call.1} parent=5 // pred_check
        _
      $region26: #{tpu_custom_call.1} parent=5 // pred_check_branch
        %231 = sbr.rel (%p228) target = $region28
      $region27: #{tpu_custom_call.1} parent=5 // pred_region
        %s232 = ssub.s32 %s22, 1
        %s233 = sand.u32 %s58, 1
        %s234 = scalar_lea.sflag [#allocation3], %s233
        %s235 = sand.u32 %s58, 1
        %s236 = smul.addr %s235, 8
        %s237 = scalar_lea.vmem [#allocation2], %s236
        // Predicated region
        $region29: #{tpu_custom_call.1} parent=27 // pred_check
          %p238 = pneg %p71
        $region30: #{tpu_custom_call.1} parent=27 // pred_check_branch
          %240 = sbr.rel (%p238) target = $region32
        $region31: #{tpu_custom_call.1} parent=27 // pred_region
          %241 = dma.done %s234, 128
        $region32: #{tpu_custom_call.1} parent=27 // pred_fallthru
          _
        %s242 = sand.u32 %s88, 1
        %s243 = scalar_lea.sflag [#allocation6], %s242
        %s244 = sand.u32 %s88, 1
        %s245 = smul.addr %s244, 4
        %s246 = scalar_lea.vmem [#allocation5], %s245
        // Predicated region
        $region33: #{tpu_custom_call.1} parent=27 // pred_check
          %p247 = pneg %p101
        $region34: #{tpu_custom_call.1} parent=27 // pred_check_branch
          %249 = sbr.rel (%p247) target = $region36
        $region35: #{tpu_custom_call.1} parent=27 // pred_region
          %250 = dma.done %s243, 64
        $region36: #{tpu_custom_call.1} parent=27 // pred_fallthru
          _
        %s251 = sand.u32 %s58, 1
        %s252 = scalar_lea.sflag [#allocation3], %s251
        %s253 = sand.u32 %s58, 1
        %s254 = smul.addr %s253, 8
        %s255 = scalar_lea.vmem [#allocation2], %s254
        %p256 = pneg %p71
        %p257 = pneg %p68
        %s258 = sand.u32 %s88, 1
        %s259 = scalar_lea.sflag [#allocation6], %s258
        %s260 = sand.u32 %s88, 1
        %s261 = smul.addr %s260, 4
        %s262 = scalar_lea.vmem [#allocation5], %s261
        %p263 = pneg %p101
        %p264 = pneg %p98
        %p265 = pneg %p131
        %p266 = pneg %p128
        %s267 = sand.u32 %s118, 1
        %s268 = scalar_lea.sflag [#allocation4], %s267
        %s269 = sand.u32 %s118, 1
        %s270 = smul.addr %s269, 4
        %s271 = scalar_lea.vmem [#allocation7], %s270
        %p272 = pneg %p161
        %p273 = pneg %p158
        %s274 = sand.u32 %s148, 1
        %s275 = scalar_lea.sflag [#allocation9], %s274
        %s276 = sand.u32 %s148, 1
        %s277 = smul.addr %s276, 4
        %s278 = scalar_lea.vmem [#allocation8], %s277
        %s279 = sadd.s32 %s32, %s34
        %s280 = sadd.s32 %s32, %s34
        %s281 = smul.u32 %s32, 2
        %s282 = sadd.s32 %s281, %s33
        %s283 = smul.u32 %s32, 2
        %s284 = sadd.s32 %s283, %s33
        %p285 = scmp.eq.s32.totalorder %s34, 0
        // Predicated region
        $region37: #{tpu_custom_call.1} parent=27 // pred_check
          %p286 = pneg %p285
        $region38: #{tpu_custom_call.1} parent=27 // pred_check_branch
          %288 = sbr.rel (%p286) target = $region40
        $region39: #{tpu_custom_call.1} parent=27 // pred_region
          %289 = vst [vmem:[%s271] sm:$0xf] 0.0
          %290 = vst [vmem:[%s278] sm:$0xf] 0.0
        $region40: #{tpu_custom_call.1} parent=27 // pred_fallthru
          _
        %v291 = vld [vmem:[%s237] sm:$0x3]
        %v292 = vld [vmem:[%s237 + $0x2] sm:$0x3]
        %v293 = vld [vmem:[%s237 + $0x4] sm:$0x3]
        %v294 = vld [vmem:[%s237 + $0x6] sm:$0x3]
        %v295 = vld [vmem:[%s246] sm:$0x1]
        %v296 = vld [vmem:[%s246 + $0x1] sm:$0x1]
        %v297 = vld [vmem:[%s246 + $0x2] sm:$0x1]
        %v298 = vld [vmem:[%s246 + $0x3] sm:$0x1]
        %v299 = vunpack.c.l.bf16 %v295
        %v300 = vunpack.c.l.bf16 %v296
        %v301 = vunpack.c.l.bf16 %v297
        %v302 = vunpack.c.l.bf16 %v298
        %vm303 = vcmask 1041408
        %v304 = vsel %vm303, %v291, -inf
        %v305 = vsel %vm303, %v292, -inf
        %v306 = vsel %vm303, %v293, -inf
        %v307 = vsel %vm303, %v294, -inf
        %v308 = vmax.f32 %v304, %v305
        %v309 = vmax.f32 %v306, %v307
        %v310 = vmax.f32 %v308, %v309
        %v311 = vsub.f32 %v291, %v310
        %v312 = vsub.f32 %v292, %v310
        %v313 = vsub.f32 %v293, %v310
        %v314 = vsub.f32 %v294, %v310
        %v315 = vmul.f32 %v311, 1.442695
        %v316 = vpow.pop %v315
        %v317 = vmul.f32 %v312, 1.442695
        %v318 = vpow.pop %v317
        %v319 = vmul.f32 %v313, 1.442695
        %v320 = vpow.pop %v319
        %v321 = vmul.f32 %v314, 1.442695
        %v322 = vpow.pop %v321
        %v323 = vsel %vm303, %v316, 0.0
        %v324 = vsel %vm303, %v318, 0.0
        %v325 = vadd.f32 %v323, %v324
        %v326 = vsel %vm303, %v320, 0.0
        %v327 = vadd.f32 %v325, %v326
        %v328 = vsel %vm303, %v322, 0.0
        %v329 = vadd.f32 %v327, %v328
        %v330 = vrcp.pop %v329
        %v331 = vmul.f32 %v329, %v330
        %v332 = vsub.f32 2.0, %v331
        %v333 = vmul.f32 %v330, %v332
        %v334 = vmul.f32 %v329, %v333
        %v335 = vsub.f32 2.0, %v334
        %v336 = vmul.f32 %v333, %v335
        %v337 = vmul.f32 %v316, %v336
        %v338 = vmul.f32 %v318, %v336
        %v339 = vmul.f32 %v320, %v336
        %v340 = vmul.f32 %v322, %v336
        %v341 = vld [vmem:[%s271] sm:$0xf]
        %v342 = vmul.f32 %v337, %v299
        %v343 = vmul.f32 %v338, %v300
        %v344 = vmul.f32 %v339, %v301
        %v345 = vmul.f32 %v340, %v302
        %v346 = vsel %vm303, %v342, 0.0
        %v347 = vrot.slane %v346, 4
        %v348 = vadd.f32 %v346, %v347
        %v349 = vrot.slane %v348, 2
        %v350 = vadd.f32 %v348, %v349
        %v351 = vrot.slane %v350, 1
        %v352 = vadd.f32 %v350, %v351
        %v353 = vsel %vm303, %v343, 0.0
        %v354 = vrot.slane %v353, 4
        %v355 = vadd.f32 %v353, %v354
        %v356 = vrot.slane %v355, 2
        %v357 = vadd.f32 %v355, %v356
        %v358 = vrot.slane %v357, 1
        %v359 = vadd.f32 %v357, %v358
        %v360 = vsel %vm303, %v344, 0.0
        %v361 = vrot.slane %v360, 4
        %v362 = vadd.f32 %v360, %v361
        %v363 = vrot.slane %v362, 2
        %v364 = vadd.f32 %v362, %v363
        %v365 = vrot.slane %v364, 1
        %v366 = vadd.f32 %v364, %v365
        %v367 = vsel %vm303, %v345, 0.0
        %v368 = vrot.slane %v367, 4
        %v369 = vadd.f32 %v367, %v368
        %v370 = vrot.slane %v369, 2
        %v371 = vadd.f32 %v369, %v370
        %v372 = vrot.slane %v371, 1
        %v373 = vadd.f32 %v371, %v372
        %vm378 = vcmask 1041409
        %v379 = vsel %vm378, %v359, %v352
        %vm380 = vcmask 1042434
        %v381 = vsel %vm380, %v366, %v379
        %vm382 = vcmask 1043459
        %v383 = vsel %vm382, %v373, %v381
        %v385 = vadd.f32 %v341, %v383
        %386 = vst [vmem:[%s271] sm:$0xf] %v385
        %v387 = vsel %vm303, %v299, 0.0
        %v388 = vrot.slane %v387, 4
        %v389 = vadd.f32 %v387, %v388
        %v390 = vrot.slane %v389, 2
        %v391 = vadd.f32 %v389, %v390
        %v392 = vrot.slane %v391, 1
        %v393 = vadd.f32 %v391, %v392
        %v394 = vsel %vm303, %v300, 0.0
        %v395 = vrot.slane %v394, 4
        %v396 = vadd.f32 %v394, %v395
        %v397 = vrot.slane %v396, 2
        %v398 = vadd.f32 %v396, %v397
        %v399 = vrot.slane %v398, 1
        %v400 = vadd.f32 %v398, %v399
        %v401 = vsel %vm303, %v301, 0.0
        %v402 = vrot.slane %v401, 4
        %v403 = vadd.f32 %v401, %v402
        %v404 = vrot.slane %v403, 2
        %v405 = vadd.f32 %v403, %v404
        %v406 = vrot.slane %v405, 1
        %v407 = vadd.f32 %v405, %v406
        %v408 = vsel %vm303, %v302, 0.0
        %v409 = vrot.slane %v408, 4
        %v410 = vadd.f32 %v408, %v409
        %v411 = vrot.slane %v410, 2
        %v412 = vadd.f32 %v410, %v411
        %v413 = vrot.slane %v412, 1
        %v414 = vadd.f32 %v412, %v413
        %v415 = vld [vmem:[%s278] sm:$0xf]
        %v416 = vsel %vm303, %v337, 0.0
        %v417 = vrot.slane %v416, 4
        %v418 = vadd.f32 %v416, %v417
        %v419 = vrot.slane %v418, 2
        %v420 = vadd.f32 %v418, %v419
        %v421 = vrot.slane %v420, 1
        %v422 = vadd.f32 %v420, %v421
        %v423 = vsel %vm303, %v338, 0.0
        %v424 = vrot.slane %v423, 4
        %v425 = vadd.f32 %v423, %v424
        %v426 = vrot.slane %v425, 2
        %v427 = vadd.f32 %v425, %v426
        %v428 = vrot.slane %v427, 1
        %v429 = vadd.f32 %v427, %v428
        %v430 = vsel %vm303, %v339, 0.0
        %v431 = vrot.slane %v430, 4
        %v432 = vadd.f32 %v430, %v431
        %v433 = vrot.slane %v432, 2
        %v434 = vadd.f32 %v432, %v433
        %v435 = vrot.slane %v434, 1
        %v436 = vadd.f32 %v434, %v435
        %v437 = vsel %vm303, %v340, 0.0
        %v438 = vrot.slane %v437, 4
        %v439 = vadd.f32 %v437, %v438
        %v440 = vrot.slane %v439, 2
        %v441 = vadd.f32 %v439, %v440
        %v442 = vrot.slane %v441, 1
        %v443 = vadd.f32 %v441, %v442
        %v444 = vadd.f32 %v422, %v393
        %v445 = vadd.f32 %v429, %v400
        %v446 = vadd.f32 %v436, %v407
        %v447 = vadd.f32 %v443, %v414
        %v452 = vsel %vm378, %v445, %v444
        %v453 = vsel %vm380, %v446, %v452
        %v454 = vsel %vm382, %v447, %v453
        %v456 = vadd.f32 %v415, %v454
        %457 = vst [vmem:[%s278] sm:$0xf] %v456
        %s458 = sand.u32 %s118, 1
        %s459 = scalar_lea.sflag [#allocation4], %s458
        %s460 = sand.u32 %s118, 1
        %s461 = smul.addr %s460, 4
        %s462 = scalar_lea.vmem [#allocation7], %s461
        %s463 = sand.u32 %s148, 1
        %s464 = scalar_lea.sflag [#allocation9], %s463
        %s465 = sand.u32 %s148, 1
        %s466 = smul.addr %s465, 4
        %s467 = scalar_lea.vmem [#allocation8], %s466
        // Predicated region
        $region41: #{tpu_custom_call.1} parent=27 // pred_check
          %p468 = pneg %p128
        $region42: #{tpu_custom_call.1} parent=27 // pred_check_branch
          %470 = sbr.rel (%p468) target = $region44
        $region43: #{tpu_custom_call.1} parent=27 // pred_region
          %s471 = smul.u32 %s32, 2
          %s472 = sadd.s32 %s471, %s33
          %s474 = ssub.s32 64, 64
          %475 = vsyncadd %s459, %s474
          %s476 = smul.addr %s472, 64
          %s477 = scalar_lea.hbm %s2, %s476
          %s479 = sshll.u32 %s462, 4
          %s480 = int_to_ptr.vmem [resolvable:$true] %s479
          %482 = dma.vmem_to_hbm [thread:$0]  %s480, 64, %s477, %s459
        $region44: #{tpu_custom_call.1} parent=27 // pred_fallthru
          _
        // Predicated region
        $region45: #{tpu_custom_call.1} parent=27 // pred_check
          %p483 = pneg %p158
        $region46: #{tpu_custom_call.1} parent=27 // pred_check_branch
          %485 = sbr.rel (%p483) target = $region48
        $region47: #{tpu_custom_call.1} parent=27 // pred_region
          %s486 = smul.u32 %s32, 2
          %s487 = sadd.s32 %s486, %s33
          %s489 = ssub.s32 64, 64
          %490 = vsyncadd %s464, %s489
          %s491 = smul.addr %s487, 64
          %s492 = scalar_lea.hbm %s3, %s491
          %s494 = sshll.u32 %s467, 4
          %s495 = int_to_ptr.vmem [resolvable:$true] %s494
          %497 = dma.vmem_to_hbm [thread:$0]  %s495, 64, %s492, %s464
        $region48: #{tpu_custom_call.1} parent=27 // pred_fallthru
          _
      $region28: #{tpu_custom_call.1} parent=5 // pred_fallthru
        _
      %p498 = scmp.le.s32.totalorder 2, %s22
      // Predicated region
      $region49: #{tpu_custom_call.1} parent=5 // pred_check
        %p499 = pneg %p498
      $region50: #{tpu_custom_call.1} parent=5 // pred_check_branch
        %501 = sbr.rel (%p499) target = $region52
      $region51: #{tpu_custom_call.1} parent=5 // pred_region
        %s502 = ssub.s32 %s22, 2
        // Predicated region
        $region53: #{tpu_custom_call.1} parent=51 // pred_check
          %p503 = pneg %p134
        $region54: #{tpu_custom_call.1} parent=51 // pred_check_branch
          %505 = sbr.rel (%p503) target = $region56
        $region55: #{tpu_custom_call.1} parent=51 // pred_region
          %s506 = sand.u32 %s119, 1
          %s507 = scalar_lea.sflag [#allocation4], %s506
          %s508 = sand.u32 %s119, 1
          %s509 = smul.addr %s508, 4
          %s510 = scalar_lea.vmem [#allocation7], %s509
          %511 = dma.done %s507, 64
        $region56: #{tpu_custom_call.1} parent=51 // pred_fallthru
          _
        // Predicated region
        $region57: #{tpu_custom_call.1} parent=51 // pred_check
          %p512 = pneg %p164
        $region58: #{tpu_custom_call.1} parent=51 // pred_check_branch
          %514 = sbr.rel (%p512) target = $region60
        $region59: #{tpu_custom_call.1} parent=51 // pred_region
          %s515 = sand.u32 %s149, 1
          %s516 = scalar_lea.sflag [#allocation9], %s515
          %s517 = sand.u32 %s149, 1
          %s518 = smul.addr %s517, 4
          %s519 = scalar_lea.vmem [#allocation8], %s518
          %520 = dma.done %s516, 64
        $region60: #{tpu_custom_call.1} parent=51 // pred_fallthru
          _
      $region52: #{tpu_custom_call.1} parent=5 // pred_fallthru
        _
    $region6: #{tpu_custom_call.1} parent=1 // loop_footer
      %s26 = sadd.s32 1, %s22
    $region7: #{tpu_custom_call.1} parent=1 // loop_footer_branch
      %21 = sbr.rel target = $region3
    $region8: #{tpu_custom_call.1} parent=1 // loop_exit
      _
    %521 = vsyncpa [#allocation3], 1
    %s522 = scalar_lea.sflag [#allocation3], 1
    %523 = vsyncpa %s522, 1
    %524 = vsyncpa [#allocation6], 1
    %s525 = scalar_lea.sflag [#allocation6], 1
    %526 = vsyncpa %s525, 1
    %527 = vsyncpa [#allocation4], 1
    %s528 = scalar_lea.sflag [#allocation4], 1
    %529 = vsyncpa %s528, 1
    %530 = vsyncpa [#allocation9], 1
    %s531 = scalar_lea.sflag [#allocation9], 1
    %532 = vsyncpa %s531, 1

</llo_original>
